<compile_context>
chip_gen: v6e
topology: v6e:2x2x1
jax: 0.10.0
libtpu: 0.0.40
codegen_flags: <defaults>
</compile_context>

<pallas_src>
import jax
import jax.numpy as jnp
from jax import lax
from jax.experimental import pallas as pl
from jax.experimental.pallas import tpu as pltpu


# ---------------------------------------------------------------------------
# Single-step kernel (matches ctrnnCell.forward(state, inputs))
# ---------------------------------------------------------------------------
def _ctrnn_step_kernel(dt_ref, state_ref, inputs_ref, w_ref, b_ref, tau_ref,
                       out_ref, acc_ref):
    n = pl.program_id(0)                 # output (N) tile
    k = pl.program_id(1)                 # contraction (K) tile
    tn = out_ref.shape[1]
    tk = w_ref.shape[1]

    @pl.when(k == 0)
    def _():
        acc_ref[...] = jnp.zeros_like(acc_ref)

    # K-slice of the (fully VMEM-resident) state for this partial product.
    k_off = pl.multiple_of(k * tk, tk)
    s_k = state_ref[:, pl.ds(k_off, tk)]                      # (B, tk)
    # nn.Linear layout: contract state dim 1 with W dim 1 ("in") -> no transpose.
    acc_ref[...] += lax.dot_general(
        s_k.astype(w_ref.dtype), w_ref[...],
        dimension_numbers=(((1,), (1,)), ((), ())),
        preferred_element_type=jnp.float32)

    @pl.when(k == pl.num_programs(1) - 1)
    def _():
        n_off = pl.multiple_of(n * tn, tn)
        z = acc_ref[...] + b_ref[...]                         # (B, tn)
        f = pl.reciprocal(1.0 + jnp.exp(-z), approx=False)    # sigmoid (exp on EUP)
        dt_tau = dt_ref[0] / tau_ref[...]                     # (1, tn) row vector
        s_n = state_ref[:, pl.ds(n_off, tn)]
        x_n = inputs_ref[:, pl.ds(n_off, tn)]
        out_ref[...] = (s_n * (1.0 - dt_tau)
                        + dt_tau * (f + x_n)).astype(out_ref.dtype)


def _pick_tile(dim, preferred):
    for t in preferred:
        if dim % t == 0:
            return t
    return dim


def ctrnn_cell(state, inputs, w, b, tau, dt, *, weight_dtype=None):
    """One CTRNN step. state/inputs: (B, dim) f32; w: (dim, dim) nn.Linear weight
    (out, in); b: (dim,); tau: (1, dim) or (dim,); dt: scalar."""
    B, dim = state.shape
    assert w.shape == (dim, dim)
    if weight_dtype is not None:
        w = w.astype(weight_dtype)
    b2 = b.reshape(1, dim).astype(jnp.float32)
    tau2 = tau.reshape(1, dim).astype(jnp.float32)
    dt_arr = jnp.asarray(dt, dtype=jnp.float32).reshape(1)

    tn = _pick_tile(dim, (256, 128))
    tk = _pick_tile(dim, (512, 256, 128))
    grid = (dim // tn, dim // tk)

    return pl.pallas_call(
        _ctrnn_step_kernel,
        out_shape=jax.ShapeDtypeStruct((B, dim), state.dtype),
        grid_spec=pltpu.PrefetchScalarGridSpec(
            num_scalar_prefetch=0,
            grid=grid,
            in_specs=[
                pl.BlockSpec(memory_space=pltpu.MemorySpace.SMEM),   # dt scalar
                pl.BlockSpec((B, dim), lambda n, k: (0, 0)),         # state (resident)
                pl.BlockSpec((B, dim), lambda n, k: (0, 0)),         # inputs (resident)
                pl.BlockSpec((tn, tk), lambda n, k: (n, k)),         # W (out,in) tile
                pl.BlockSpec((1, tn), lambda n, k: (0, n)),          # bias tile
                pl.BlockSpec((1, tn), lambda n, k: (0, n)),          # tau tile
            ],
            out_specs=pl.BlockSpec((B, tn), lambda n, k: (0, n)),
            scratch_shapes=[pltpu.VMEM((B, tn), jnp.float32)],
        ),
        compiler_params=pltpu.CompilerParams(
            dimension_semantics=("parallel", "arbitrary")),
    )(dt_arr, state, inputs, w, b2, tau2)


# ---------------------------------------------------------------------------
# Fused T-step recurrence: one pallas_call, weight resident across all steps.
# ---------------------------------------------------------------------------
def _ctrnn_seq_kernel(dt_ref, state0_ref, inputs_ref, w_ref, b_ref, tau_ref,
                      out_ref, state_scr, dt_tau_scr):
    t = pl.program_id(0)

    @pl.when(t == 0)
    def _():
        state_scr[...] = state0_ref[...].astype(jnp.float32)
        dt_tau_scr[...] = dt_ref[0] / tau_ref[...]     # hoisted: computed once

    state = state_scr[...]                             # (B, dim) f32 carry
    z = lax.dot_general(
        state.astype(w_ref.dtype), w_ref[...],
        dimension_numbers=(((1,), (1,)), ((), ())),
        preferred_element_type=jnp.float32) + b_ref[...]
    f = pl.reciprocal(1.0 + jnp.exp(-z), approx=False)
    dt_tau = dt_tau_scr[...]
    x = inputs_ref[0].astype(jnp.float32)              # (B, dim) input at step t
    new_state = state * (1.0 - dt_tau) + dt_tau * (f + x)
    state_scr[...] = new_state
    out_ref[0] = new_state.astype(out_ref.dtype)


def ctrnn_cell_seq(state0, inputs_seq, w, b, tau, dt, *, weight_dtype=None):
    """Apply the CTRNN cell T times. inputs_seq: (T, B, dim); returns (T, B, dim)
    stack of states. The full (dim, dim) weight stays resident in VMEM across all
    T steps (one HBM load total instead of one per step)."""
    T, B, dim = inputs_seq.shape
    assert state0.shape == (B, dim) and w.shape == (dim, dim)
    if weight_dtype is not None:
        w = w.astype(weight_dtype)
    b2 = b.reshape(1, dim).astype(jnp.float32)
    tau2 = tau.reshape(1, dim).astype(jnp.float32)
    dt_arr = jnp.asarray(dt, dtype=jnp.float32).reshape(1)
    # NOTE: for very large dim (weight slab > ~24 MiB, e.g. dim >= 4096 in f32 on
    # v7x's 64 MiB VMEM) the weight would additionally need N-tiling; fine here.

    return pl.pallas_call(
        _ctrnn_seq_kernel,
        out_shape=jax.ShapeDtypeStruct((T, B, dim), state0.dtype),
        grid_spec=pltpu.PrefetchScalarGridSpec(
            num_scalar_prefetch=0,
            grid=(T,),
            in_specs=[
                pl.BlockSpec(memory_space=pltpu.MemorySpace.SMEM),   # dt scalar
                pl.BlockSpec((B, dim), lambda t: (0, 0)),            # initial state
                pl.BlockSpec((1, B, dim), lambda t: (t, 0, 0)),      # inputs[t]
                pl.BlockSpec((dim, dim), lambda t: (0, 0)),          # W resident over T
                pl.BlockSpec((1, dim), lambda t: (0, 0)),            # bias resident
                pl.BlockSpec((1, dim), lambda t: (0, 0)),            # tau resident
            ],
            out_specs=pl.BlockSpec((1, B, dim), lambda t: (t, 0, 0)),
            scratch_shapes=[pltpu.VMEM((B, dim), jnp.float32),       # state carry
                            pltpu.VMEM((1, dim), jnp.float32)],      # dt/tau
        ),
        compiler_params=pltpu.CompilerParams(
            dimension_semantics=("arbitrary",)),      # sequential recurrence
    )(dt_arr, state0, inputs_seq, w, b2, tau2)


# ---------------------------------------------------------------------------
# Pure-JAX references
# ---------------------------------------------------------------------------
def ctrnn_cell_ref(state, inputs, w, b, tau, dt):
    dt_tau = dt / tau
    f = jax.nn.sigmoid(state @ w.T + b)
    return state * (1.0 - dt_tau) + dt_tau * (f + inputs)


def ctrnn_seq_ref(state0, inputs_seq, w, b, tau, dt):
    def step(s, x):
        s1 = ctrnn_cell_ref(s, x, w, b, tau, dt)
        return s1, s1
    _, outs = lax.scan(step, state0, inputs_seq)
    return outs


if __name__ == "__main__":
    B, dim, T = 8, 128, 6
    dt = 0.1

    key = jax.random.PRNGKey(0)
    ks = jax.random.split(key, 6)
    state = jax.random.normal(ks[0], (B, dim), dtype=jnp.float32)
    inputs = jax.random.normal(ks[1], (B, dim), dtype=jnp.float32)
    inputs_seq = jax.random.normal(ks[2], (T, B, dim), dtype=jnp.float32)

    # Synthetic ctrnnCell parameters (nn.Linear init-style, tau = ones(1, dim)).
    bound = 1.0 / jnp.sqrt(dim)
    w = jax.random.uniform(ks[3], (dim, dim), minval=-bound, maxval=bound,
                           dtype=jnp.float32)
    b = jax.random.uniform(ks[4], (dim,), minval=-bound, maxval=bound,
                           dtype=jnp.float32)
    tau = jnp.ones((1, dim), dtype=jnp.float32)

    # 1) Single step (module forward), f32 weights.
    out = jax.block_until_ready(ctrnn_cell(state, inputs, w, b, tau, dt))
    ref = ctrnn_cell_ref(state, inputs, w, b, tau, dt)
    assert out.shape == (B, dim)
    assert jnp.allclose(out, ref, atol=1e-5, rtol=1e-5), "single-step mismatch"

    # 2) Fused T-step recurrence (weight resident in VMEM across all steps).
    out_seq = jax.block_until_ready(ctrnn_cell_seq(state, inputs_seq, w, b, tau, dt))
    ref_seq = ctrnn_seq_ref(state, inputs_seq, w, b, tau, dt)
    assert out_seq.shape == (T, B, dim)
    assert jnp.allclose(out_seq, ref_seq, atol=5e-4, rtol=5e-4), "seq mismatch"

    # 3) bf16 weights: halves weight HBM traffic; element-wise math stays f32.
    out_bf16 = jax.block_until_ready(
        ctrnn_cell(state, inputs, w, b, tau, dt, weight_dtype=jnp.bfloat16))
    assert jnp.allclose(out_bf16, ref, atol=2e-2, rtol=2e-2), "bf16 mismatch"

    print("KERNEL_OK")
</pallas_src>

<mosaic_0001>
module attributes {stable_mosaic.version = 11 : i64} {
  func.func @_ctrnn_step_kernel(%arg0: i32, %arg1: i32, %arg2: memref<1xf32, #tpu.memory_space<smem>>, %arg3: memref<8x128xf32, #tpu.memory_space<vmem>>, %arg4: memref<8x128xf32, #tpu.memory_space<vmem>>, %arg5: memref<128x128xf32, #tpu.memory_space<vmem>>, %arg6: memref<1x128xf32, #tpu.memory_space<vmem>>, %arg7: memref<1x128xf32, #tpu.memory_space<vmem>>, %arg8: memref<8x128xf32, #tpu.memory_space<vmem>>, %arg9: memref<8x128xf32, #tpu.memory_space<vmem>>) attributes {dimension_semantics = [#tpu.dimension_semantics<parallel>, #tpu.dimension_semantics<arbitrary>], iteration_bounds = array<i64: 1, 1>, scalar_prefetch = 0 : i64, scratch_operands = 1 : i64, tpu.core_type = #tpu.core_type<tc>, window_params = [{transform_indices = @transform_0, window_bounds = array<i64: 1>}, {pipeline_mode = #tpu.pipeline_mode<synchronous>, transform_indices = @transform_1, window_bounds = array<i64: 8, 128>}, {pipeline_mode = #tpu.pipeline_mode<synchronous>, transform_indices = @transform_2, window_bounds = array<i64: 8, 128>}, {transform_indices = @transform_3, window_bounds = array<i64: 128, 128>}, {transform_indices = @transform_4, window_bounds = array<i64: 1, 128>}, {transform_indices = @transform_5, window_bounds = array<i64: 1, 128>}, {transform_indices = @transform_6, window_bounds = array<i64: 8, 128>}]} {
    %c0_i32 = arith.constant 0 : i32
    %0 = arith.cmpi eq, %arg1, %c0_i32 : i32
    %1 = arith.extui %0 : i1 to i32
    %c0_i32_0 = arith.constant 0 : i32
    %2 = arith.cmpi ne, %1, %c0_i32_0 : i32
    scf.if %2 {
      %cst_9 = arith.constant 0.000000e+00 : f32
      %15 = vector.broadcast %cst_9 : f32 to vector<8x128xf32>
      %c0_10 = arith.constant 0 : index
      %c0_11 = arith.constant 0 : index
      %16 = vector.load %arg9[%c0_10, %c0_11] : memref<8x128xf32, #tpu.memory_space<vmem>>, vector<8x128xf32>
      tpu.vector_store %arg9[%c0_10, %c0_11], %15 {strides = array<i32>} : memref<8x128xf32, #tpu.memory_space<vmem>>, vector<8x128xf32>,
    } else {
    }
    %c128_i32 = arith.constant 128 : i32
    %3 = arith.muli %arg1, %c128_i32 : i32
    %4 = tpu.assume_multiple %3, 128 : i32
    %c0 = arith.constant 0 : index
    %5 = arith.index_cast %4 : i32 to index
    %6 = vector.load %arg3[%c0, %5] : memref<8x128xf32, #tpu.memory_space<vmem>>, vector<8x128xf32>
    %c0_1 = arith.constant 0 : index
    %c0_2 = arith.constant 0 : index
    %7 = vector.load %arg9[%c0_1, %c0_2] : memref<8x128xf32, #tpu.memory_space<vmem>>, vector<8x128xf32>
    %c0_3 = arith.constant 0 : index
    %c0_4 = arith.constant 0 : index
    %8 = vector.load %arg5[%c0_3, %c0_4] : memref<128x128xf32, #tpu.memory_space<vmem>>, vector<128x128xf32>
    %cst = arith.constant dense<0.000000e+00> : vector<8x128xf32>
    %9 = tpu.matmul %6, %8, %cst {dimension_numbers = #tpu.dot_dimension_numbers<[1], [1], [0], [0], [0, 0, 1, 0], [], []>} : vector<8x128xf32>, vector<128x128xf32>, vector<8x128xf32> -> vector<8x128xf32>
    %10 = arith.addf %7, %9 : vector<8x128xf32>
    %c0_5 = arith.constant 0 : index
    %c0_6 = arith.constant 0 : index
    %11 = vector.load %arg9[%c0_5, %c0_6] : memref<8x128xf32, #tpu.memory_space<vmem>>, vector<8x128xf32>
    tpu.vector_store %arg9[%c0_5, %c0_6], %10 {strides = array<i32>} : memref<8x128xf32, #tpu.memory_space<vmem>>, vector<8x128xf32>,
    %c0_i32_7 = arith.constant 0 : i32
    %12 = arith.cmpi eq, %arg1, %c0_i32_7 : i32
    %13 = arith.extui %12 : i1 to i32
    %c0_i32_8 = arith.constant 0 : i32
    %14 = arith.cmpi ne, %13, %c0_i32_8 : i32
    scf.if %14 {
      %c128_i32_9 = arith.constant 128 : i32
      %15 = arith.muli %arg0, %c128_i32_9 : i32
      %16 = tpu.assume_multiple %15, 128 : i32
      %c0_10 = arith.constant 0 : index
      %c0_11 = arith.constant 0 : index
      %17 = vector.load %arg9[%c0_10, %c0_11] : memref<8x128xf32, #tpu.memory_space<vmem>>, vector<8x128xf32>
      %c0_12 = arith.constant 0 : index
      %c0_13 = arith.constant 0 : index
      %18 = vector.load %arg6[%c0_12, %c0_13] : memref<1x128xf32, #tpu.memory_space<vmem>>, vector<1x128xf32>
      %19 = vector.broadcast %18 : vector<1x128xf32> to vector<8x128xf32>
      %20 = arith.addf %17, %19 : vector<8x128xf32>
      %cst_14 = arith.constant 0.000000e+00 : f32
      %21 = vector.broadcast %cst_14 : f32 to vector<8x128xf32>
      %22 = arith.subf %21, %20 : vector<8x128xf32>
      %23 = math.exp %22 : vector<8x128xf32>
      %cst_15 = arith.constant 1.000000e+00 : f32
      %24 = vector.broadcast %cst_15 : f32 to vector<8x128xf32>
      %25 = arith.addf %24, %23 : vector<8x128xf32>
      %26 = tpu.reciprocal %25 : vector<8x128xf32> -> vector<8x128xf32>
      %c0_16 = arith.constant 0 : index
      %27 = memref.load %arg2[%c0_16] : memref<1xf32, #tpu.memory_space<smem>>
      %c0_17 = arith.constant 0 : index
      %c0_18 = arith.constant 0 : index
      %28 = vector.load %arg7[%c0_17, %c0_18] : memref<1x128xf32, #tpu.memory_space<vmem>>, vector<1x128xf32>
      %29 = vector.broadcast %27 : f32 to vector<1x128xf32>
      %30 = arith.divf %29, %28 : vector<1x128xf32>
      %c0_19 = arith.constant 0 : index
      %31 = arith.index_cast %16 : i32 to index
      %32 = vector.load %arg3[%c0_19, %31] : memref<8x128xf32, #tpu.memory_space<vmem>>, vector<8x128xf32>
      %c0_20 = arith.constant 0 : index
      %33 = arith.index_cast %16 : i32 to index
      %34 = vector.load %arg4[%c0_20, %33] : memref<8x128xf32, #tpu.memory_space<vmem>>, vector<8x128xf32>
      %cst_21 = arith.constant 1.000000e+00 : f32
      %35 = vector.broadcast %cst_21 : f32 to vector<1x128xf32>
      %36 = arith.subf %35, %30 : vector<1x128xf32>
      %37 = vector.broadcast %36 : vector<1x128xf32> to vector<8x128xf32>
      %38 = arith.mulf %32, %37 : vector<8x128xf32>
      %39 = arith.addf %26, %34 : vector<8x128xf32>
      %40 = vector.broadcast %30 : vector<1x128xf32> to vector<8x128xf32>
      %41 = arith.mulf %40, %39 : vector<8x128xf32>
      %42 = arith.addf %38, %41 : vector<8x128xf32>
      %c0_22 = arith.constant 0 : index
      %c0_23 = arith.constant 0 : index
      %43 = vector.load %arg8[%c0_22, %c0_23] : memref<8x128xf32, #tpu.memory_space<vmem>>, vector<8x128xf32>
      tpu.vector_store %arg8[%c0_22, %c0_23], %42 {strides = array<i32>} : memref<8x128xf32, #tpu.memory_space<vmem>>, vector<8x128xf32>,
    } else {
    }
    return
  }
  func.func @transform_0(%arg0: i32, %arg1: i32) -> i32 {
    %c0_i32 = arith.constant 0 : i32
    %c0_i32_0 = arith.constant 0 : i32
    return %c0_i32 : i32
  }
  func.func @transform_1(%arg0: i32, %arg1: i32) -> (i32, i32) {
    %c0_i32 = arith.constant 0 : i32
    %c0_i32_0 = arith.constant 0 : i32
    %c0_i32_1 = arith.constant 0 : i32
    return %c0_i32, %c0_i32_0 : i32, i32
  }
  func.func @transform_2(%arg0: i32, %arg1: i32) -> (i32, i32) {
    %c0_i32 = arith.constant 0 : i32
    %c0_i32_0 = arith.constant 0 : i32
    %c0_i32_1 = arith.constant 0 : i32
    return %c0_i32, %c0_i32_0 : i32, i32
  }
  func.func @transform_3(%arg0: i32, %arg1: i32) -> (i32, i32) {
    %c0_i32 = arith.constant 0 : i32
    return %arg0, %arg1 : i32, i32
  }
  func.func @transform_4(%arg0: i32, %arg1: i32) -> (i32, i32) {
    %c0_i32 = arith.constant 0 : i32
    %c0_i32_0 = arith.constant 0 : i32
    return %c0_i32, %arg0 : i32, i32
  }
  func.func @transform_5(%arg0: i32, %arg1: i32) -> (i32, i32) {
    %c0_i32 = arith.constant 0 : i32
    %c0_i32_0 = arith.constant 0 : i32
    return %c0_i32, %arg0 : i32, i32
  }
  func.func @transform_6(%arg0: i32, %arg1: i32) -> (i32, i32) {
    %c0_i32 = arith.constant 0 : i32
    %c0_i32_0 = arith.constant 0 : i32
    return %c0_i32, %arg0 : i32, i32
  }
}

</mosaic_0001>

<llo_original>
// kernel: tpu_custom_call.1
$region0: #{tpu_custom_call.1}
  #allocation0 [shape = 'u32[]', space=smem, size = 0x4, offset = 0x4, fixed_abs, tag = 'smem constant byte address 0x4 - core index']
  #allocation1 [shape = 'u32[144,128]{1,0:T(1,128)}', space=vmem, size = 0x12000, scoped, tag = 'internal scratch']
  #allocation2 [shape = 'f32[8,128]{1,0:T(8,128)}', space=vmem, size = 0x1000, scoped, tag = 'scratch operand']
  #allocation3 [shape = 'f32[1]{0:T(128)S(6)}', space=smem, size = 0x200, scoped, tag = 'scoped memory for tpu_custom_call.1']
  %s0 = inlined_call_operand.<no memory space> [shape: f32[1], index: 0, kind: input, shape index: {}]
  %s1 = inlined_call_operand.hbm [shape: f32[8,128], index: 1, kind: input, shape index: {}]
  %s2 = inlined_call_operand.hbm [shape: f32[8,128], index: 2, kind: input, shape index: {}]
  %s3 = inlined_call_operand.hbm [shape: f32[128,128], index: 3, kind: input, shape index: {}]
  %s4 = inlined_call_operand.vmem [shape: f32[1,128], index: 4, kind: input, shape index: {}]
  %s5 = inlined_call_operand.vmem [shape: f32[1,128], index: 5, kind: input, shape index: {}]
  %s6 = inlined_call_operand.hbm [shape: f32[8,128], index: 6, kind: output, shape index: {}]
  %s7 = sld [smem:[#allocation0]]
  $region54: #{tpu_custom_call.1} parent=0
    _
  %s9 = ssub.s32 1, %s7
  %s10 = scalar_select 0, %s9, %s7
  %11 = sst [smem:[#allocation3]] %s0
  $region1: #{tpu_custom_call.1} parent=0
    #allocation4 [shape = 'u8[4096]{0}', space=vmem, size = 0x1000, scoped, tag = 'input window, operand 1, single buffered']
    #allocation5 [shape = 's32[1]{0}', space=sflag, size = 0x4, scoped, tag = 'scoped memory for tpu_custom_call.1']
    #allocation6 [shape = 's32[1]{0}', space=sflag, size = 0x4, scoped, tag = 'scoped memory for tpu_custom_call.1']
    #allocation7 [shape = 'u8[4096]{0}', space=vmem, size = 0x1000, scoped, tag = 'input window, operand 2, single buffered']
    #allocation8 [shape = 's32[1]{0}', space=sflag, size = 0x4, scoped, tag = 'scoped memory for tpu_custom_call.1']
    #allocation9 [shape = 'u8[65536]{0}', space=vmem, size = 0x10000, scoped, tag = 'input window, operand 3, single buffered']
    #allocation10 [shape = 'u8[4096]{0}', space=vmem, size = 0x1000, scoped, tag = 'output window, operand 0, single buffered']
    %12 = vsyncpa [#allocation5], 0
    %13 = vsyncpa [#allocation8], 0
    %14 = vsyncpa [#allocation6], 0
    // Predicated region
    $region2: #{tpu_custom_call.1} parent=1 // pred_check
      _
    $region3: #{tpu_custom_call.1} parent=1 // pred_check_branch
      %16 = sbr.rel (0) target = $region5
    $region4: #{tpu_custom_call.1} parent=1 // pred_region
      _
    $region5: #{tpu_custom_call.1} parent=1 // pred_fallthru
      _
    // Predicated region
    $region6: #{tpu_custom_call.1} parent=1 // pred_check
      _
    $region7: #{tpu_custom_call.1} parent=1 // pred_check_branch
      %18 = sbr.rel (0) target = $region9
    $region8: #{tpu_custom_call.1} parent=1 // pred_region
      %s20 = ssub.s32 128, 128
      %21 = vsyncadd [#allocation5], %s20
      %s23 = sshll.u32 [#allocation4], 4
      %s24 = int_to_ptr.vmem [resolvable:$true] %s23
      %26 = dma.hbm_to_vmem [thread:$0]  %s1, 128, %s24, [#allocation5]
    $region9: #{tpu_custom_call.1} parent=1 // pred_fallthru
      _
    // Predicated region
    $region10: #{tpu_custom_call.1} parent=1 // pred_check
      _
    $region11: #{tpu_custom_call.1} parent=1 // pred_check_branch
      %28 = sbr.rel (0) target = $region13
    $region12: #{tpu_custom_call.1} parent=1 // pred_region
      %s30 = ssub.s32 128, 128
      %31 = vsyncadd [#allocation8], %s30
      %s33 = sshll.u32 [#allocation7], 4
      %s34 = int_to_ptr.vmem [resolvable:$true] %s33
      %36 = dma.hbm_to_vmem [thread:$0]  %s2, 128, %s34, [#allocation8]
    $region13: #{tpu_custom_call.1} parent=1 // pred_fallthru
      _
    // Predicated region
    $region14: #{tpu_custom_call.1} parent=1 // pred_check
      _
    $region15: #{tpu_custom_call.1} parent=1 // pred_check_branch
      %38 = sbr.rel (0) target = $region17
    $region16: #{tpu_custom_call.1} parent=1 // pred_region
      %s40 = ssub.s32 2048, 2048
      %41 = vsyncadd [#allocation8], %s40
      %s42 = sshll.u32 [#allocation9], 4
      %s43 = int_to_ptr.vmem [resolvable:$true] %s42
      %48 = dma.hbm_to_vmem [thread:$0]  %s3, 2048, %s43, [#allocation8], 128, 128, 8
    $region17: #{tpu_custom_call.1} parent=1 // pred_fallthru
      _
    // Predicated region
    $region18: #{tpu_custom_call.1} parent=1 // pred_check
      _
    $region19: #{tpu_custom_call.1} parent=1 // pred_check_branch
      %50 = sbr.rel (0) target = $region21
    $region20: #{tpu_custom_call.1} parent=1 // pred_region
      _
    $region21: #{tpu_custom_call.1} parent=1 // pred_fallthru
      _
    // Predicated region
    $region22: #{tpu_custom_call.1} parent=1 // pred_check
      _
    $region23: #{tpu_custom_call.1} parent=1 // pred_check_branch
      %52 = sbr.rel (0) target = $region25
    $region24: #{tpu_custom_call.1} parent=1 // pred_region
      _
    $region25: #{tpu_custom_call.1} parent=1 // pred_fallthru
      _
    // Predicated region
    $region26: #{tpu_custom_call.1} parent=1 // pred_check
      _
    $region27: #{tpu_custom_call.1} parent=1 // pred_check_branch
      %54 = sbr.rel (0) target = $region29
    $region28: #{tpu_custom_call.1} parent=1 // pred_region
      %55 = dma.done [#allocation5], 128
    $region29: #{tpu_custom_call.1} parent=1 // pred_fallthru
      _
    // Predicated region
    $region30: #{tpu_custom_call.1} parent=1 // pred_check
      _
    $region31: #{tpu_custom_call.1} parent=1 // pred_check_branch
      %57 = sbr.rel (0) target = $region33
    $region32: #{tpu_custom_call.1} parent=1 // pred_region
      %58 = dma.done [#allocation8], 128
    $region33: #{tpu_custom_call.1} parent=1 // pred_fallthru
      _
    // Predicated region
    $region34: #{tpu_custom_call.1} parent=1 // pred_check
      _
    $region35: #{tpu_custom_call.1} parent=1 // pred_check_branch
      %60 = sbr.rel (0) target = $region37
    $region36: #{tpu_custom_call.1} parent=1 // pred_region
      %61 = dma.done [#allocation8], 2048
    $region37: #{tpu_custom_call.1} parent=1 // pred_fallthru
      _
    %p62 = scmp.eq.s32.totalorder 0, 0
    // Predicated region
    $region38: #{tpu_custom_call.1} parent=1 // pred_check
      %p63 = pneg %p62
    $region39: #{tpu_custom_call.1} parent=1 // pred_check_branch
      %65 = sbr.rel (%p63) target = $region41
    $region40: #{tpu_custom_call.1} parent=1 // pred_region
      %66 = vst [vmem:[#allocation2] sm:$0xff] 0.0
    $region41: #{tpu_custom_call.1} parent=1 // pred_fallthru
      _
    %s67 = smul.u32 0, 128
    %s68 = sshra.s32 %s67, 7
    %s69 = sand.u32 %s67, 127
    %s70 = scalar_lea.vmem [#allocation4], %s68
    %v71 = vld [vmem:[%s70] sm:$0xff]
    %v72 = vld [vmem:[#allocation2] sm:$0xff]
    %v73 = vld [vmem:[#allocation9] sm:$0xff]
    %v74 = vld [vmem:[#allocation9 + $0x8] sm:$0xff]
    %v75 = vld [vmem:[#allocation9 + $0x10] sm:$0xff]
    %v76 = vld [vmem:[#allocation9 + $0x18] sm:$0xff]
    %v77 = vld [vmem:[#allocation9 + $0x20] sm:$0xff]
    %v78 = vld [vmem:[#allocation9 + $0x28] sm:$0xff]
    %v79 = vld [vmem:[#allocation9 + $0x30] sm:$0xff]
    %v80 = vld [vmem:[#allocation9 + $0x38] sm:$0xff]
    %v81 = vld [vmem:[#allocation9 + $0x40] sm:$0xff]
    %v82 = vld [vmem:[#allocation9 + $0x48] sm:$0xff]
    %v83 = vld [vmem:[#allocation9 + $0x50] sm:$0xff]
    %v84 = vld [vmem:[#allocation9 + $0x58] sm:$0xff]
    %v85 = vld [vmem:[#allocation9 + $0x60] sm:$0xff]
    %v86 = vld [vmem:[#allocation9 + $0x68] sm:$0xff]
    %v87 = vld [vmem:[#allocation9 + $0x70] sm:$0xff]
    %v88 = vld [vmem:[#allocation9 + $0x78] sm:$0xff]
    %89 = vmatprep.subr.mxu0 0.0
    %90 = vmatpush1.xpose.msra.mxu0 %v88
    %91 = vmatprep.subr.mxu0 0.0
    %92 = vmatpush1.xpose.msra.mxu0 %v87
    %93 = vmatprep.subr.mxu0 0.0
    %94 = vmatpush1.xpose.msra.mxu0 %v86
    %95 = vmatprep.subr.mxu0 0.0
    %96 = vmatpush1.xpose.msra.mxu0 %v85
    %97 = vmatprep.subr.mxu0 0.0
    %98 = vmatpush1.xpose.msra.mxu0 %v84
    %99 = vmatprep.subr.mxu0 0.0
    %100 = vmatpush1.xpose.msra.mxu0 %v83
    %101 = vmatprep.subr.mxu0 0.0
    %102 = vmatpush1.xpose.msra.mxu0 %v82
    %103 = vmatprep.subr.mxu0 0.0
    %104 = vmatpush1.xpose.msra.mxu0 %v81
    %105 = vmatprep.subr.mxu0 0.0
    %106 = vmatpush1.xpose.msra.mxu0 %v80
    %107 = vmatprep.subr.mxu0 0.0
    %108 = vmatpush1.xpose.msra.mxu0 %v79
    %109 = vmatprep.subr.mxu0 0.0
    %110 = vmatpush1.xpose.msra.mxu0 %v78
    %111 = vmatprep.subr.mxu0 0.0
    %112 = vmatpush1.xpose.msra.mxu0 %v77
    %113 = vmatprep.subr.mxu0 0.0
    %114 = vmatpush1.xpose.msra.mxu0 %v76
    %115 = vmatprep.subr.mxu0 0.0
    %116 = vmatpush1.xpose.msra.mxu0 %v75
    %117 = vmatprep.subr.mxu0 0.0
    %118 = vmatpush1.xpose.msra.mxu0 %v74
    %119 = vmatprep.subr.mxu0 0.0
    %120 = vmatpush1.xpose.msra.mxu0 %v73
    %121 = vmatprep.subr.mxu0 0.0
    %122 = vmatpush2.xpose.msra.mxu0 0.0
    %123 = vmatprep.subr.mxu0 0.0
    %124 = vmatpush2.xpose.msra.mxu0 0.0
    %125 = vmatprep.subr.mxu0 0.0
    %126 = vmatpush2.xpose.msra.mxu0 0.0
    %127 = vmatprep.subr.mxu0 0.0
    %128 = vmatpush2.xpose.msra.mxu0 0.0
    %129 = vmatprep.subr.mxu0 0.0
    %130 = vmatpush2.xpose.msra.mxu0 0.0
    %131 = vmatprep.subr.mxu0 0.0
    %132 = vmatpush2.xpose.msra.mxu0 0.0
    %133 = vmatprep.subr.mxu0 0.0
    %134 = vmatpush2.xpose.msra.mxu0 0.0
    %135 = vmatprep.subr.mxu0 0.0
    %136 = vmatpush2.xpose.msra.mxu0 0.0
    %137 = vmatprep.subr.mxu0 0.0
    %138 = vmatpush2.xpose.msra.mxu0 0.0
    %139 = vmatprep.subr.mxu0 0.0
    %140 = vmatpush2.xpose.msra.mxu0 0.0
    %141 = vmatprep.subr.mxu0 0.0
    %142 = vmatpush2.xpose.msra.mxu0 0.0
    %143 = vmatprep.subr.mxu0 0.0
    %144 = vmatpush2.xpose.msra.mxu0 0.0
    %145 = vmatprep.subr.mxu0 0.0
    %146 = vmatpush2.xpose.msra.mxu0 0.0
    %147 = vmatprep.subr.mxu0 0.0
    %148 = vmatpush2.xpose.msra.mxu0 0.0
    %149 = vmatprep.subr.mxu0 0.0
    %150 = vmatpush2.xpose.msra.mxu0 0.0
    %151 = vmatprep.subr.mxu0 0.0
    %152 = vmatpush2.xpose.msra.mxu0 0.0
    %153 = vmatprep.mubr.f32.mxu0 0.0
    %154 = vmatmul.mubr.f32.gmra.mxu0 %v71
    %v155 = vpop.f32.mrf.mxu0
    %v156 = vadd.f32 0.0, %v155
    %v157 = vpop.f32.mrf.mxu0
    %158 = vdwg.mxu0
    %v159 = vadd.f32 %v72, %v156
    %160 = vst [vmem:[#allocation2] sm:$0xff] %v159
    // Predicated region
    $region42: #{tpu_custom_call.1} parent=1 // pred_check
      %p161 = pneg %p62
    $region43: #{tpu_custom_call.1} parent=1 // pred_check_branch
      %163 = sbr.rel (%p161) target = $region45
    $region44: #{tpu_custom_call.1} parent=1 // pred_region
      %s164 = smul.u32 0, 128
      %v165 = vld [vmem:[#allocation2] sm:$0xff]
      %v166 = vld [vmem:[%s4] sm:$0x1]
      %v168 = vlaneseq
      %v169 = vshrl.u32 %v168, 7
      %v170 = vsub.s32 0, %v169
      %v171 = vrot.slane %v166, %v170
      %v173 = vadd.f32 %v165, %v171
      %v174 = vsub.f32 0.0, %v173
      %v175 = vmul.f32 %v174, 1.442695
      %v176 = vpow.pop %v175
      %v177 = vadd.f32 %v176, 1.0
      %v178 = vrcp.pop %v177
      %s179 = sld [smem:[#allocation3]]
      %v180 = vld [vmem:[%s5] sm:$0x1]
      %v181 = vstv %s179
      %v182 = vrcp.pop %v180
      %v183 = vmul.f32 %v181, %v182
      %s184 = sshra.s32 %s164, 7
      %s185 = sand.u32 %s164, 127
      %s186 = scalar_lea.vmem [#allocation4], %s184
      %v187 = vld [vmem:[%s186] sm:$0xff]
      %s188 = scalar_lea.vmem [#allocation7], %s184
      %v189 = vld [vmem:[%s188] sm:$0xff]
      %v190 = vsub.f32 1.0, %v183
      %v192 = vlaneseq
      %v193 = vshrl.u32 %v192, 7
      %v194 = vsub.s32 0, %v193
      %v195 = vrot.slane %v190, %v194
      %v197 = vmul.f32 %v187, %v195
      %v198 = vadd.f32 %v178, %v189
      %v200 = vlaneseq
      %v201 = vshrl.u32 %v200, 7
      %v202 = vsub.s32 0, %v201
      %v203 = vrot.slane %v183, %v202
      %v205 = vmul.f32 %v203, %v198
      %v206 = vadd.f32 %v197, %v205
      %207 = vst [vmem:[#allocation10] sm:$0xff] %v206
    $region45: #{tpu_custom_call.1} parent=1 // pred_fallthru
      _
    // Predicated region
    $region46: #{tpu_custom_call.1} parent=1 // pred_check
      _
    $region47: #{tpu_custom_call.1} parent=1 // pred_check_branch
      %209 = sbr.rel (0) target = $region49
    $region48: #{tpu_custom_call.1} parent=1 // pred_region
      %s211 = ssub.s32 128, 128
      %212 = vsyncadd [#allocation6], %s211
      %s214 = sshll.u32 [#allocation10], 4
      %s215 = int_to_ptr.vmem [resolvable:$true] %s214
      %217 = dma.vmem_to_hbm [thread:$0]  %s215, 128, %s6, [#allocation6]
    $region49: #{tpu_custom_call.1} parent=1 // pred_fallthru
      _
    // Predicated region
    $region50: #{tpu_custom_call.1} parent=1 // pred_check
      _
    $region51: #{tpu_custom_call.1} parent=1 // pred_check_branch
      %219 = sbr.rel (0) target = $region53
    $region52: #{tpu_custom_call.1} parent=1 // pred_region
      %220 = dma.done [#allocation6], 128
    $region53: #{tpu_custom_call.1} parent=1 // pred_fallthru
      _
    %221 = vsyncpa [#allocation5], 1
    %222 = vsyncpa [#allocation8], 1
    %223 = vsyncpa [#allocation6], 1

</llo_original>
